<compile_context>
chip_gen: v5e
topology: v5e:2x2
jax: 0.10.0
libtpu: 0.0.40
codegen_flags: <defaults>
</compile_context>

<pallas_src>
import functools

import jax
import jax.numpy as jnp
from jax import lax
from jax.experimental import pallas as pl
from jax.experimental.pallas import tpu as pltpu


def _ce_kernel(n_rows, n_cols, nc_tiles, ragged_n, ragged_c,
               logits_ref, out_ref, m_ref, l_ref):
    """One (batch_tile, class_tile) step of online-softmax logsumexp."""
    i = pl.program_id(0)          # batch-tile index
    j = pl.program_id(1)          # class-tile index (reduction axis)
    tn, tc = logits_ref.shape

    # ---- init running accumulators at the first class tile of each row tile
    @pl.when(j == 0)
    def _():
        m_ref[...] = jnp.full_like(m_ref, -jnp.inf)   # running row max
        l_ref[...] = jnp.zeros_like(l_ref)            # running exp-sum

    # ones column for the MXU lane-sum (constant, folded by the compiler)
    ones_col = jnp.ones((tc, 1), jnp.float32)

    def update(xf):
        """Online max / exp-sum update on an f32 (tn, tc) tile."""
        m_prev = m_ref[...]
        m_new = jnp.maximum(m_prev, jnp.max(xf, axis=-1, keepdims=True))
        alpha = jnp.exp(m_prev - m_new)
        e = jnp.exp(xf - m_new)                       # masked cols -> exp(-inf)=0
        # lane-sum on the idle MXU instead of VPU adds + XLU reduce
        l_ref[...] = alpha * l_ref[...] + jnp.dot(
            e, ones_col, preferred_element_type=jnp.float32)
        m_ref[...] = m_new

    # single upcast; needed anyway for the exp argument / f32 accumulation
    xf = logits_ref[...].astype(jnp.float32)          # (tn, tc)

    if not ragged_c:
        # every class tile is full -> mask-free fast path on all tiles
        update(xf)
    else:
        is_last_c = j == nc_tiles - 1

        @pl.when(jnp.logical_not(is_last_c))
        def _():                                      # interior tiles: no mask
            update(xf)

        @pl.when(is_last_c)
        def _():                                      # only the ragged tail tile
            rem = n_cols % tc                         # static Python int (> 0)
            col_valid = lax.broadcasted_iota(jnp.int32, (1, tc), 1) < rem
            update(jnp.where(col_valid, xf, -jnp.inf))

    # ---- finalize: per-row logsumexp, masked sum over valid rows
    @pl.when(j == nc_tiles - 1)
    def _():
        lse = m_ref[...] + jnp.log(l_ref[...])        # (tn, 1)
        if ragged_n:
            rows_left = n_rows - i * tn
            row_id = lax.broadcasted_iota(jnp.int32, (tn, 1), 0)
            lse = jnp.where(row_id < rows_left, lse, 0.0)   # select, not multiply
        out_ref[...] = jnp.sum(lse, keepdims=True)    # (1, 1)


def classify_cross_entropy(
    logits: jax.Array,
    y: jax.Array,
    *,
    batch_tile: int = 256,
    class_tile: int = 4096,
) -> jax.Array:
    """Pallas equivalent of ClassifyCrossEntropy.forward(logits, y).

    logits: (N, C) float array (f32 or bf16), y: (N,) int labels in [0, C).
    Returns scalar float32 loss (mean over the batch).
    """
    n, c = logits.shape
    itemsize = jnp.dtype(logits.dtype).itemsize
    # sublane packing: 8 rows for 32-bit, 16 for 16-bit dtypes
    sub = 8 if itemsize >= 4 else 16

    # Tile sizes: full dim when it fits, else aligned tiles (TN % sub == 0,
    # TC % 128 == 0).
    tn = n if n <= batch_tile else max((batch_tile // sub) * sub, sub)
    tc = c if c <= class_tile else max((class_tile // 128) * 128, 128)

    nb = pl.cdiv(n, tn)
    # Make sure both megacore TensorCores get a batch tile when possible.
    if nb < 2 and n >= 2 * sub:
        half = (n + 1) // 2
        tn = ((half + sub - 1) // sub) * sub
        nb = pl.cdiv(n, tn)
    nc = pl.cdiv(c, tc)

    ragged_n = (n % tn) != 0
    ragged_c = (c % tc) != 0

    kernel = functools.partial(_ce_kernel, n, c, nc, ragged_n, ragged_c)

    partials = pl.pallas_call(
        kernel,
        out_shape=jax.ShapeDtypeStruct((nb, 1), jnp.float32),
        grid_spec=pltpu.PrefetchScalarGridSpec(
            num_scalar_prefetch=0,
            grid=(nb, nc),
            in_specs=[
                pl.BlockSpec((tn, tc), lambda i, j: (i, j)),   # logits tile
            ],
            out_specs=pl.BlockSpec((1, 1), lambda i, j: (i, 0)),
            scratch_shapes=[
                pltpu.VMEM((tn, 1), jnp.float32),   # running max
                pltpu.VMEM((tn, 1), jnp.float32),   # running exp-sum
            ],
        ),
        compiler_params=pltpu.CompilerParams(
            dimension_semantics=("parallel", "arbitrary"),
            vmem_limit_bytes=64 * 1024 * 1024,
        ),
        cost_estimate=pl.CostEstimate(
            flops=4 * n * c,
            transcendentals=n * c,
            bytes_accessed=n * c * itemsize + nb * 4,
        ),
    )(logits)

    # Target-logit gather hoisted out of the streaming loop: reads N elements
    # (negligible vs the N*C streamed by the kernel).
    picked = jnp.take_along_axis(
        logits, y.astype(jnp.int32).reshape(n, 1), axis=-1
    ).astype(jnp.float32)

    # mean_i ( logsumexp_i - logit_{i, y_i} )
    return (jnp.sum(partials) - jnp.sum(picked)) / jnp.float32(n)


if __name__ == "__main__":
    key = jax.random.PRNGKey(0)
    k1, k2, k3, k4 = jax.random.split(key, 4)

    def ref_loss(logits, y):
        lp = jax.nn.log_softmax(logits.astype(jnp.float32), axis=-1)
        return -jnp.mean(jnp.take_along_axis(lp, y[:, None], axis=-1))

    # Case 1: small f32 problem, single tile (mask-free fast path).
    N, C = 8, 32
    logits = jax.random.normal(k1, (N, C), dtype=jnp.float32)
    y = jax.random.randint(k2, (N,), 0, C, dtype=jnp.int32)
    loss = jax.block_until_ready(classify_cross_entropy(logits, y))
    ref = ref_loss(logits, y)
    assert jnp.allclose(loss, ref, atol=1e-5), (loss, ref)

    # Case 2: bf16 logits, non-divisible shapes with small tile caps to
    # exercise the online-softmax multi-tile path, the interior mask-free
    # tiles, the ragged last class tile, and the padded batch-row masking.
    N2, C2 = 20, 300
    logits2 = jax.random.normal(k3, (N2, C2), dtype=jnp.bfloat16)
    y2 = jax.random.randint(k4, (N2,), 0, C2, dtype=jnp.int32)
    loss2 = jax.block_until_ready(
        classify_cross_entropy(logits2, y2, batch_tile=8, class_tile=128)
    )
    ref2 = ref_loss(logits2, y2)
    assert jnp.allclose(loss2, ref2, atol=5e-3, rtol=5e-3), (loss2, ref2)

    print("KERNEL_OK")
</pallas_src>

<mosaic_0001>
module attributes {stable_mosaic.version = 11 : i64} {
  func.func @_ce_kernel(%arg0: i32, %arg1: i32, %arg2: memref<8x32xf32, #tpu.memory_space<vmem>>, %arg3: memref<1x1xf32, #tpu.memory_space<vmem>>, %arg4: memref<8x1xf32, #tpu.memory_space<vmem>>, %arg5: memref<8x1xf32, #tpu.memory_space<vmem>>) attributes {dimension_semantics = [#tpu.dimension_semantics<parallel>, #tpu.dimension_semantics<arbitrary>], iteration_bounds = array<i64: 1, 1>, scalar_prefetch = 0 : i64, scratch_operands = 2 : i64, tpu.core_type = #tpu.core_type<tc>, window_params = [{transform_indices = @transform_0, window_bounds = array<i64: 8, 32>}, {transform_indices = @transform_1, window_bounds = array<i64: 1, 1>}]} {
    %c0_i32 = arith.constant 0 : i32
    %0 = arith.cmpi eq, %arg1, %c0_i32 : i32
    %1 = arith.extui %0 : i1 to i32
    %c0_i32_0 = arith.constant 0 : i32
    %2 = arith.cmpi ne, %1, %c0_i32_0 : i32
    scf.if %2 {
      %cst_14 = arith.constant 0xFF800000 : f32
      %23 = vector.broadcast %cst_14 : f32 to vector<8x1xf32>
      %c0_15 = arith.constant 0 : index
      %c0_16 = arith.constant 0 : index
      %24 = vector.load %arg4[%c0_15, %c0_16] : memref<8x1xf32, #tpu.memory_space<vmem>>, vector<8x1xf32>
      tpu.vector_store %arg4[%c0_15, %c0_16], %23 {strides = array<i32>} : memref<8x1xf32, #tpu.memory_space<vmem>>, vector<8x1xf32>,
      %cst_17 = arith.constant 0.000000e+00 : f32
      %25 = vector.broadcast %cst_17 : f32 to vector<8x1xf32>
      %c0_18 = arith.constant 0 : index
      %c0_19 = arith.constant 0 : index
      %26 = vector.load %arg5[%c0_18, %c0_19] : memref<8x1xf32, #tpu.memory_space<vmem>>, vector<8x1xf32>
      tpu.vector_store %arg5[%c0_18, %c0_19], %25 {strides = array<i32>} : memref<8x1xf32, #tpu.memory_space<vmem>>, vector<8x1xf32>,
    } else {
    }
    %cst = arith.constant 1.000000e+00 : f32
    %3 = vector.broadcast %cst : f32 to vector<32x1xf32>
    %c0 = arith.constant 0 : index
    %c0_1 = arith.constant 0 : index
    %4 = vector.load %arg2[%c0, %c0_1] : memref<8x32xf32, #tpu.memory_space<vmem>>, vector<8x32xf32>
    %c0_2 = arith.constant 0 : index
    %c0_3 = arith.constant 0 : index
    %5 = vector.load %arg4[%c0_2, %c0_3] : memref<8x1xf32, #tpu.memory_space<vmem>>, vector<8x1xf32>
    %cst_4 = arith.constant dense<0xFF800000> : vector<8xf32>
    %6 = vector.multi_reduction <maximumf>, %4, %cst_4 [1] : vector<8x32xf32> to vector<8xf32>
    %7 = vector.shape_cast %6 : vector<8xf32> to vector<8x1xf32>
    %8 = arith.maximumf %5, %7 : vector<8x1xf32>
    %9 = arith.subf %5, %8 : vector<8x1xf32>
    %10 = math.exp %9 : vector<8x1xf32>
    %11 = vector.broadcast %8 : vector<8x1xf32> to vector<8x32xf32>
    %12 = arith.subf %4, %11 : vector<8x32xf32>
    %13 = math.exp %12 : vector<8x32xf32>
    %c0_5 = arith.constant 0 : index
    %c0_6 = arith.constant 0 : index
    %14 = vector.load %arg5[%c0_5, %c0_6] : memref<8x1xf32, #tpu.memory_space<vmem>>, vector<8x1xf32>
    %15 = arith.mulf %10, %14 : vector<8x1xf32>
    %cst_7 = arith.constant dense<0.000000e+00> : vector<8x1xf32>
    %16 = tpu.matmul %13, %3, %cst_7 {dimension_numbers = #tpu.dot_dimension_numbers<[1], [0], [0], [1], [0, 0, 1, 1], [], []>} : vector<8x32xf32>, vector<32x1xf32>, vector<8x1xf32> -> vector<8x1xf32>
    %17 = arith.addf %15, %16 : vector<8x1xf32>
    %c0_8 = arith.constant 0 : index
    %c0_9 = arith.constant 0 : index
    %18 = vector.load %arg5[%c0_8, %c0_9] : memref<8x1xf32, #tpu.memory_space<vmem>>, vector<8x1xf32>
    tpu.vector_store %arg5[%c0_8, %c0_9], %17 {strides = array<i32>} : memref<8x1xf32, #tpu.memory_space<vmem>>, vector<8x1xf32>,
    %c0_10 = arith.constant 0 : index
    %c0_11 = arith.constant 0 : index
    %19 = vector.load %arg4[%c0_10, %c0_11] : memref<8x1xf32, #tpu.memory_space<vmem>>, vector<8x1xf32>
    tpu.vector_store %arg4[%c0_10, %c0_11], %8 {strides = array<i32>} : memref<8x1xf32, #tpu.memory_space<vmem>>, vector<8x1xf32>,
    %c0_i32_12 = arith.constant 0 : i32
    %20 = arith.cmpi eq, %arg1, %c0_i32_12 : i32
    %21 = arith.extui %20 : i1 to i32
    %c0_i32_13 = arith.constant 0 : i32
    %22 = arith.cmpi ne, %21, %c0_i32_13 : i32
    scf.if %22 {
      %c0_14 = arith.constant 0 : index
      %c0_15 = arith.constant 0 : index
      %23 = vector.load %arg4[%c0_14, %c0_15] : memref<8x1xf32, #tpu.memory_space<vmem>>, vector<8x1xf32>
      %c0_16 = arith.constant 0 : index
      %c0_17 = arith.constant 0 : index
      %24 = vector.load %arg5[%c0_16, %c0_17] : memref<8x1xf32, #tpu.memory_space<vmem>>, vector<8x1xf32>
      %25 = math.log %24 : vector<8x1xf32>
      %26 = arith.addf %23, %25 : vector<8x1xf32>
      %27 = vector.shape_cast %26 : vector<8x1xf32> to vector<1x8x1xf32>
      %cst_18 = arith.constant dense<0.000000e+00> : vector<1xf32>
      %28 = vector.multi_reduction <add>, %27, %cst_18 [1, 2] : vector<1x8x1xf32> to vector<1xf32>
      %29 = vector.shape_cast %28 : vector<1xf32> to vector<1x1x1xf32>
      %30 = vector.extract %29[0, 0, 0] : f32 from vector<1x1x1xf32>
      %31 = vector.broadcast %30 : f32 to vector<1x1xf32>
      %c0_19 = arith.constant 0 : index
      %c0_20 = arith.constant 0 : index
      %32 = vector.load %arg3[%c0_19, %c0_20] : memref<1x1xf32, #tpu.memory_space<vmem>>, vector<1x1xf32>
      tpu.vector_store %arg3[%c0_19, %c0_20], %31 {strides = array<i32>} : memref<1x1xf32, #tpu.memory_space<vmem>>, vector<1x1xf32>,
    } else {
    }
    return
  }
  func.func @transform_0(%arg0: i32, %arg1: i32) -> (i32, i32) {
    %c0_i32 = arith.constant 0 : i32
    return %arg0, %arg1 : i32, i32
  }
  func.func @transform_1(%arg0: i32, %arg1: i32) -> (i32, i32) {
    %c0_i32 = arith.constant 0 : i32
    %c0_i32_0 = arith.constant 0 : i32
    return %arg0, %c0_i32 : i32, i32
  }
}

</mosaic_0001>

<llo_original>
// kernel: tpu_custom_call.1
$region0: #{tpu_custom_call.1}
  #allocation0 [shape = 'u32[]', space=smem, size = 0x4, offset = 0x4, fixed_abs, tag = 'smem constant byte address 0x4 - core index']
  #allocation1 [shape = 'u32[72,128]{1,0:T(1,128)}', space=vmem, size = 0x9000, scoped, tag = 'internal scratch']
  #allocation2 [shape = 'f32[8,1]{1,0:T(8,128)}', space=vmem, size = 0x1000, scoped, tag = 'scratch operand']
  #allocation3 [shape = 'f32[8,1]{1,0:T(8,128)}', space=vmem, size = 0x1000, scoped, tag = 'scratch operand']
  %s0 = inlined_call_operand.hbm [shape: f32[8,32], index: 0, kind: input, shape index: {}]
  %s1 = inlined_call_operand.hbm [shape: f32[1,1], index: 1, kind: output, shape index: {}]
  %s2 = sld [smem:[#allocation0]]
  $region26: #{tpu_custom_call.1} parent=0
    _
  %s4 = ssub.s32 1, %s2
  %s5 = scalar_select 0, %s4, %s2
  $region1: #{tpu_custom_call.1} parent=0
    #allocation4 [shape = 'u8[4096]{0}', space=vmem, size = 0x1000, scoped, tag = 'input window, operand 0, single buffered']
    #allocation5 [shape = 's32[1]{0}', space=sflag, size = 0x4, scoped, tag = 'scoped memory for tpu_custom_call.1']
    #allocation6 [shape = 's32[1]{0}', space=sflag, size = 0x4, scoped, tag = 'scoped memory for tpu_custom_call.1']
    #allocation7 [shape = 'u8[512]{0}', space=vmem, size = 0x400, scoped, tag = 'output window, operand 0, single buffered']
    %6 = vsyncpa [#allocation5], 0
    %7 = vsyncpa [#allocation6], 0
    // Predicated region
    $region2: #{tpu_custom_call.1} parent=1 // pred_check
      _
    $region3: #{tpu_custom_call.1} parent=1 // pred_check_branch
      %9 = sbr.rel (0) target = $region5
    $region4: #{tpu_custom_call.1} parent=1 // pred_region
      %11 = vsyncadd [#allocation5], 0
      %s13 = sshll.u32 %s0, 4
      %s14 = int_to_ptr.hbm [resolvable:$true] %s13
      %s15 = sshll.u32 [#allocation4], 4
      %s16 = int_to_ptr.vmem [resolvable:$true] %s15
      %18 = dma.hbm_to_vmem [thread:$0]  %s14, 128, %s16, [#allocation5]
    $region5: #{tpu_custom_call.1} parent=1 // pred_fallthru
      _
    // Predicated region
    $region6: #{tpu_custom_call.1} parent=1 // pred_check
      _
    $region7: #{tpu_custom_call.1} parent=1 // pred_check_branch
      %20 = sbr.rel (0) target = $region9
    $region8: #{tpu_custom_call.1} parent=1 // pred_region
      %22 = dma.done [#allocation5], 128
    $region9: #{tpu_custom_call.1} parent=1 // pred_fallthru
      _
    %p23 = scmp.eq.s32.totalorder 0, 0
    // Predicated region
    $region10: #{tpu_custom_call.1} parent=1 // pred_check
      %p24 = pneg %p23
    $region11: #{tpu_custom_call.1} parent=1 // pred_check_branch
      %26 = sbr.rel (%p24) target = $region13
    $region12: #{tpu_custom_call.1} parent=1 // pred_region
      %vm27 = vcmask 7168
      %28 = vst.msk [vmem:[#allocation2] sm:$0xff] %vm27, -inf
      %29 = vst.msk [vmem:[#allocation3] sm:$0xff] %vm27, 0.0
    $region13: #{tpu_custom_call.1} parent=1 // pred_fallthru
      _
    %v30 = vld [vmem:[#allocation4] sm:$0xff]
    %v31 = vld [vmem:[#allocation2] sm:$0xff]
    %vm32 = vcmask 261120
    %v33 = vsel %vm32, %v30, -inf
    %34 = vmax.xlane.f32.xlu0 %v33
    %v35 = vpop.xlane.xlu0 %34
    %v36 = vmax.f32 %v31, %v35
    %v37 = vsub.f32 %v31, %v36
    %v38 = vmul.f32 %v37, 1.442695
    %v39 = vpow.pop %v38
    %41 = vset.pattern.permute.xlu0 0
    %42 = vperm.xlu0 %41, %v36
    %v43 = vpop.permute.xlu0 %42
    %v45 = vsub.f32 %v30, %v43
    %v46 = vmul.f32 %v45, 1.442695
    %v47 = vpow.pop %v46
    %v48 = vld [vmem:[#allocation3] sm:$0xff]
    %v49 = vmul.f32 %v39, %v48
    %v51 = vsel %vm32, %v47, 0
    %53 = vmatpush.msra.mxu0 0.0
    %54 = vmatpush.msra.mxu0 0.0
    %55 = vmatpush.msra.mxu0 0.0
    %56 = vmatpush.msra.mxu0 0.0
    %57 = vmatpush.msra.mxu0 0.0
    %58 = vmatpush.msra.mxu0 0.0
    %59 = vmatpush.msra.mxu0 0.0
    %60 = vmatpush.msra.mxu0 0.0
    %61 = vmatpush.msra.mxu0 0.0
    %62 = vmatpush.msra.mxu0 0.0
    %63 = vmatpush.msra.mxu0 0.0
    %64 = vmatpush.msra.mxu0 0.0
    %65 = vmatpush.msra.mxu0 1.0
    %66 = vmatpush.msra.mxu0 1.0
    %67 = vmatpush.msra.mxu0 1.0
    %68 = vmatpush.msra.mxu0 1.0
    %69 = vmatmul.f32.gmra.mxu0 %v51
    %v70 = vpop.f32.mrf.mxu0
    %v71 = vadd.f32 0.0, %v70
    %72 = vdwg.mxu0
    %v73 = vadd.f32 %v49, %v71
    %vm74 = vcmask 7168
    %75 = vst.msk [vmem:[#allocation3] sm:$0xff] %vm74, %v73
    %76 = vst.msk [vmem:[#allocation2] sm:$0xff] %vm74, %v36
    // Predicated region
    $region14: #{tpu_custom_call.1} parent=1 // pred_check
      %p77 = pneg %p23
    $region15: #{tpu_custom_call.1} parent=1 // pred_check_branch
      %79 = sbr.rel (%p77) target = $region17
    $region16: #{tpu_custom_call.1} parent=1 // pred_region
      %v80 = vld [vmem:[#allocation2] sm:$0xff]
      %v81 = vld [vmem:[#allocation3] sm:$0xff]
      %v82 = vlog2.pop %v81
      %v83 = vmul.f32 %v82, 0.6931472
      %v84 = vadd.f32 %v80, %v83
      %v85 = vsel %vm74, %v84, 0.0
      %86 = vadd.xlane.f32.xlu0 %v85
      %v87 = vpop.xlane.xlu0 %86
      %v88 = vrot.slane %v87, 4
      %v89 = vadd.f32 %v87, %v88
      %v90 = vrot.slane %v89, 2
      %v91 = vadd.f32 %v89, %v90
      %v92 = vrot.slane %v91, 1
      %v93 = vadd.f32 %v91, %v92
      %s94 = vtos %v93
      %v95 = vstv %s94
      %vm96 = vcmask 0
      %97 = vst.msk [vmem:[#allocation7] sm:$0x1] %vm96, %v95
    $region17: #{tpu_custom_call.1} parent=1 // pred_fallthru
      _
    // Predicated region
    $region18: #{tpu_custom_call.1} parent=1 // pred_check
      _
    $region19: #{tpu_custom_call.1} parent=1 // pred_check_branch
      %99 = sbr.rel (0) target = $region21
    $region20: #{tpu_custom_call.1} parent=1 // pred_region
      %101 = vsyncadd [#allocation6], 0
      %s103 = sshll.u32 [#allocation7], 4
      %s104 = int_to_ptr.vmem [resolvable:$true] %s103
      %s105 = sshll.u32 %s1, 4
      %s106 = int_to_ptr.hbm [resolvable:$true] %s105
      %108 = dma.vmem_to_hbm [thread:$0]  %s104, 16, %s106, [#allocation6]
    $region21: #{tpu_custom_call.1} parent=1 // pred_fallthru
      _
    // Predicated region
    $region22: #{tpu_custom_call.1} parent=1 // pred_check
      _
    $region23: #{tpu_custom_call.1} parent=1 // pred_check_branch
      %110 = sbr.rel (0) target = $region25
    $region24: #{tpu_custom_call.1} parent=1 // pred_region
      %112 = dma.done [#allocation6], 16
    $region25: #{tpu_custom_call.1} parent=1 // pred_fallthru
      _
    %113 = vsyncpa [#allocation5], 1
    %114 = vsyncpa [#allocation6], 1

</llo_original>
